<compile_context>
chip_gen: v6e
topology: v6e:2x2x1
jax: 0.10.0
libtpu: 0.0.40
codegen_flags: <defaults>
</compile_context>

<pallas_src>
import functools

import jax
import jax.numpy as jnp
from jax.experimental import pallas as pl
from jax.experimental.pallas import tpu as pltpu


_MAX_DMA_CHUNKS = 4
_MIN_CHUNK_BYTES = 512 * 1024  # don't bother splitting below ~0.5 MiB/chunk


def _make_hbm_copy_kernel(chunk_bounds):
    """Build a kernel that copies contiguous row chunks directly HBM->HBM.

    `chunk_bounds` is a static tuple of (row_start, row_count) pairs along
    axis 0 of the (rows, flat) operands.
    """
    def kernel(x_hbm, o_hbm, sem):
        copies = []
        # Issue all DMAs first (they run concurrently on the DMA engines) ...
        for i, (start, size) in enumerate(chunk_bounds):
            cp = pltpu.make_async_copy(
                x_hbm.at[pl.ds(start, size)],
                o_hbm.at[pl.ds(start, size)],
                sem.at[i],
            )
            cp.start()
            copies.append(cp)
        # ... then wait for all of them.
        for cp in copies:
            cp.wait()

    return kernel


def _chunk_rows(n_rows, total_bytes):
    """Split `n_rows` into up to _MAX_DMA_CHUNKS contiguous chunks."""
    by_bytes = max(1, total_bytes // _MIN_CHUNK_BYTES)
    n_chunks = max(1, min(_MAX_DMA_CHUNKS, n_rows, by_bytes))
    base, rem = divmod(n_rows, n_chunks)
    bounds = []
    start = 0
    for i in range(n_chunks):
        size = base + (1 if i < rem else 0)
        if size > 0:
            bounds.append((start, size))
            start += size
    return tuple(bounds)


@functools.partial(jax.jit, static_argnames=("alias_in_out",))
def vgg_forward(x, alias_in_out=False):
    """Equivalent of VGG.forward: x.view(x.shape[0], -1)."""
    n = x.shape[0]
    flat = 1
    for d in x.shape[1:]:
        flat *= d
    total = n * flat
    itemsize = jnp.dtype(x.dtype).itemsize
    total_bytes = total * itemsize

    # Row-major flatten: metadata-only reshape under jit (matches torch
    # .view(B, -1) element order exactly).
    x2d = x.reshape(n, flat)

    # Donated-buffer / view-accepting path, or degenerate size: the flatten
    # is a pure view, no bandwidth needs to be spent at all.
    if alias_in_out or total == 0:
        return x2d

    bounds = _chunk_rows(n, total_bytes)
    kernel = _make_hbm_copy_kernel(bounds)
    cost = pl.CostEstimate(flops=0, transcendentals=0,
                           bytes_accessed=2 * total_bytes)

    return pl.pallas_call(
        kernel,
        out_shape=jax.ShapeDtypeStruct((n, flat), x.dtype),
        in_specs=[pl.BlockSpec(memory_space=pl.ANY)],
        out_specs=pl.BlockSpec(memory_space=pl.ANY),
        scratch_shapes=[pltpu.SemaphoreType.DMA((len(bounds),))],
        cost_estimate=cost,
    )(x2d)


if __name__ == "__main__":
    key0, key1, key2 = jax.random.split(jax.random.PRNGKey(0), 3)

    # Small NCHW tensor consistent with a VGG-style activation (single-DMA path).
    x = jax.random.normal(key0, (2, 4, 16, 16), dtype=jnp.float32)
    y = jax.block_until_ready(vgg_forward(x))
    ref = x.reshape(x.shape[0], -1)
    assert y.shape == (2, 4 * 16 * 16), y.shape
    assert jnp.array_equal(y, ref), "mismatch vs reference flatten"

    # Larger batch exercises the 4-chunk concurrent-DMA path (2 MiB total).
    x2 = jax.random.normal(key1, (8, 64, 32, 32), dtype=jnp.float32)
    y2 = jax.block_until_ready(vgg_forward(x2))
    ref2 = x2.reshape(x2.shape[0], -1)
    assert y2.shape == ref2.shape, y2.shape
    assert jnp.array_equal(y2, ref2), "mismatch vs reference flatten (chunked)"

    # Odd sizes (no multiple-of-128 factor): the HBM->HBM DMA path has no
    # (8,128) tiling constraint, so no special fallback is needed anymore.
    x3 = jax.random.normal(key2, (3, 5, 7, 11), dtype=jnp.float32)
    y3 = jax.block_until_ready(vgg_forward(x3))
    ref3 = x3.reshape(x3.shape[0], -1)
    assert y3.shape == ref3.shape, y3.shape
    assert jnp.array_equal(y3, ref3), "mismatch vs reference flatten (odd)"

    # Donated-buffer / view path: no kernel, metadata-only reshape.
    y4 = jax.block_until_ready(vgg_forward(x, alias_in_out=True))
    assert jnp.array_equal(y4, ref), "mismatch vs reference flatten (view)"

    print("KERNEL_OK")
</pallas_src>

<mosaic_0001>
module attributes {stable_mosaic.version = 11 : i64} {
  func.func @kernel(%arg0: memref<2x1024xf32, #tpu.memory_space<any>>, %arg1: memref<2x1024xf32, #tpu.memory_space<any>>, %arg2: memref<1x!tpu.dma_semaphore, #tpu.memory_space<semaphore_mem>>) attributes {dimension_semantics = [], scalar_prefetch = 0 : i64, scratch_operands = 1 : i64, tpu.core_type = #tpu.core_type<tc>} {
    %c0_i32 = arith.constant 0 : i32
    %c0_i32_0 = arith.constant 0 : i32
    %c0_i32_1 = arith.constant 0 : i32
    %0 = tpu.memref_slice %arg0[%c0_i32_0, %c0_i32_1] : memref<2x1024xf32, #tpu.memory_space<any>> -> memref<2x1024xf32, #tpu.memory_space<any>>
    %c0_i32_2 = arith.constant 0 : i32
    %c0_i32_3 = arith.constant 0 : i32
    %1 = tpu.memref_slice %arg1[%c0_i32_2, %c0_i32_3] : memref<2x1024xf32, #tpu.memory_space<any>> -> memref<2x1024xf32, #tpu.memory_space<any>>
    %2 = tpu.memref_slice %arg2[%c0_i32] : memref<1x!tpu.dma_semaphore, #tpu.memory_space<semaphore_mem>> -> memref<1x!tpu.dma_semaphore, #tpu.memory_space<semaphore_mem>>
    %3 = tpu.memref_squeeze %2 : memref<1x!tpu.dma_semaphore, #tpu.memory_space<semaphore_mem>> -> memref<!tpu.dma_semaphore, #tpu.memory_space<semaphore_mem>>
    tpu.enqueue_dma source(%0 : memref<2x1024xf32, #tpu.memory_space<any>>) target(%1 : memref<2x1024xf32, #tpu.memory_space<any>>) target_semaphore(%3 : memref<!tpu.dma_semaphore, #tpu.memory_space<semaphore_mem>>)
    %c0_i32_4 = arith.constant 0 : i32
    %c0_i32_5 = arith.constant 0 : i32
    %c0_i32_6 = arith.constant 0 : i32
    %4 = tpu.memref_slice %arg0[%c0_i32_5, %c0_i32_6] : memref<2x1024xf32, #tpu.memory_space<any>> -> memref<2x1024xf32, #tpu.memory_space<any>>
    %c0_i32_7 = arith.constant 0 : i32
    %c0_i32_8 = arith.constant 0 : i32
    %5 = tpu.memref_slice %arg1[%c0_i32_7, %c0_i32_8] : memref<2x1024xf32, #tpu.memory_space<any>> -> memref<2x1024xf32, #tpu.memory_space<any>>
    %6 = tpu.memref_slice %arg2[%c0_i32_4] : memref<1x!tpu.dma_semaphore, #tpu.memory_space<semaphore_mem>> -> memref<1x!tpu.dma_semaphore, #tpu.memory_space<semaphore_mem>>
    %7 = tpu.memref_squeeze %6 : memref<1x!tpu.dma_semaphore, #tpu.memory_space<semaphore_mem>> -> memref<!tpu.dma_semaphore, #tpu.memory_space<semaphore_mem>>
    tpu.wait_dma2 semaphore(%7 : memref<!tpu.dma_semaphore, #tpu.memory_space<semaphore_mem>>) src(%4 : memref<2x1024xf32, #tpu.memory_space<any>>) dst(%5 : memref<2x1024xf32, #tpu.memory_space<any>>)
    return
  }
}

</mosaic_0001>

<llo_original>
// kernel: vgg_forward.1
$region0: #{vgg_forward.1}
  #allocation0 [shape = 'u32[]', space=smem, size = 0x4, offset = 0x4, fixed_abs, tag = 'smem constant byte address 0x4 - core index']
  #allocation1 [shape = 'u32[144,128]{1,0:T(1,128)}', space=vmem, size = 0x12000, scoped, tag = 'internal scratch']
  #allocation2 [shape = 's32[1]{0}', space=sflag, size = 0x4, scoped, tag = 'scratch operand']
  #allocation3 [shape = 's32[]', space=sflag, size = 0x4, offset = 0, fixed_abs, tag = 'sflag constant byte address 0x0 - dummy sync flag']
  #allocation4 [shape = 's32[]', space=sflag, size = 0x4, offset = 0, fixed_abs, tag = 'sflag constant byte address 0x0 - dummy sync flag']
  #allocation5 [shape = 'u32[]', space=smem, size = 0x4, offset = 0x44, fixed_abs, tag = 'smem constant byte address 0x44 - assertion arg 0']
  #allocation6 [shape = 'u32[]', space=smem, size = 0x4, offset = 0x48, fixed_abs, tag = 'smem constant byte address 0x48 - assertion arg 1']
  %s0 = inlined_call_operand.vmem [shape: f32[2,1024], index: 0, kind: input, shape index: {}]
  %s1 = inlined_call_operand.hbm [shape: f32[2,1024], index: 1, kind: output, shape index: {}]
  %s2 = sld [smem:[#allocation0]]
  $region6: #{vgg_forward.1} parent=0
    _
  %s4 = ssub.s32 1, %s2
  %s5 = scalar_select 0, %s4, %s2
  // Predicated region
  $region2: #{vgg_forward.1} parent=0 // pred_check
    _
  $region3: #{vgg_forward.1} parent=0 // pred_check_branch
    %7 = sbr.rel target = $region5
  $region4: #{vgg_forward.1} parent=0 // pred_region
    %8 = sst [smem:[#allocation5]] [#allocation4]
    %9 = sst [smem:[#allocation6]] [#allocation3]
  $region5: #{vgg_forward.1} parent=0 // pred_fallthru
    _
  %11 = shalt.err (0)
  %s13 = sshll.u32 %s0, 4
  %s14 = int_to_ptr.vmem [resolvable:$true] %s13
  %16 = dma.vmem_to_hbm [thread:$0]  %s14, 256, %s1, [#allocation2]
  %s17 = smul.u32 2, 1
  %s18 = smul.u32 %s17, 8
  %s19 = sshll.u32 %s18, 4
  %20 = dma.done [#allocation2], %s19
  %21 = vsyncmov [#allocation2]
  %s22 = vpop.sfrf %21
  %p23 = scmp.eq.s32.totalorder %s22, 0
  %p24 = pneg %p23
  %26 = shalt.err (%p24)

</llo_original>
